<compile_context>
chip_gen: v7x
topology: tpu7x:2x2x1
jax: 0.10.0
libtpu: 0.0.40
codegen_flags: <defaults>
</compile_context>

<pallas_src>
import jax
import jax.numpy as jnp
from jax.experimental import pallas as pl
from jax.experimental.pallas import tpu as pltpu


# ----------------------------- configuration ------------------------------ #
FIELD_DIMS = (10, 20, 30, 40)       # 4 fields
EMBED_DIM = 8
NUM_CROSS_LAYERS = 3
MLP_DIMS = (64, 32)
DROPOUT = 0.2                        # inference mode -> identity
BATCH = 8

EMBED_OUTPUT_DIM = len(FIELD_DIMS) * EMBED_DIM        # D = 32
VOCAB = sum(FIELD_DIMS)                               # shared table rows = 100
BN_EPS = 1e-5
D_AUG = EMBED_OUTPUT_DIM + 8                          # 40: +1 ones row, rest 0


def _round_up(x, m):
    return (x + m - 1) // m * m


def _field_offsets(dims):
    offs, t = [], 0
    for d in dims:
        offs.append(t)
        t += d
    return tuple(offs)


# ------------------------------ Pallas kernel ------------------------------ #
def dcn_kernel(idx_ref,     # (F, TB)      int32  raw per-field indices, batch on lanes
               tbl_ref,     # (D_AUG, Vp)  bf16   block-diag transposed table; row D = 1/F
               packa_ref,   # (H1+16, D_AUG) f32  [w1|b1 ; ones-selector ; 0 ; cross_w|0]
               packw2_ref,  # (H2, H1+8)   f32    [w2 | b2 | 0]
               wsm_ref,     # (24, 32)     f32    rows 0..7 cross_w, 8..15 lin_w_x, 16..23 lin_w_h
               cb_ref,      # (D, 8)       f32    cross biases, column l = layer l
               bl_ref,      # (1, 1)       f32    final linear bias (SMEM)
               out_ref):    # (1, TB)      f32    sigmoid(logits), batch on lanes
    num_fields, tb = idx_ref.shape
    vocab = tbl_ref.shape[1]
    D = EMBED_OUTPUT_DIM
    H1, H2 = MLP_DIMS
    L = NUM_CROSS_LAYERS
    offs = _field_offsets(FIELD_DIMS)                  # static Python constants

    # ---- fused embedding gather -------------------------------------------
    # Fields occupy disjoint ranges of the shared vocabulary; the one-hot is
    # built with boolean ORs + a single cast, emitted in bf16 for the MXU.
    idx = idx_ref[...]                                             # (F, TB) int32
    iota = jax.lax.broadcasted_iota(jnp.int32, (vocab, tb), 0)     # vocab ids on sublanes
    hit = iota == (idx[0:1, :] + offs[0])
    for f in range(1, num_fields):
        hit = hit | (iota == (idx[f:f + 1, :] + offs[f]))
    onehot = hit.astype(jnp.float32).astype(jnp.bfloat16)          # (Vp, TB) bf16

    # x0 augmented with an exact ones row (row D): table row D holds 1/F.
    x0aug = jnp.dot(tbl_ref[...], onehot,
                    preferred_element_type=jnp.float32)            # (D_AUG, TB)

    # ---- one stacked MXU pass over x0 --------------------------------------
    # rows 0..H1-1: w1@x0 + b1 ; row H1: exact ones ; rows H1+8..: cross_w@x0
    y = jnp.dot(packa_ref[...], x0aug,
                preferred_element_type=jnp.float32)                # (H1+16, TB)

    x0 = x0aug[0:D, :]                                             # (D, TB)
    cb = cb_ref[...]
    cw = wsm_ref[0:8, :]                                           # (8, D) cross weights
    wlx = wsm_ref[8:16, :]                                         # (8, D) final-linear x part
    wlh = wsm_ref[16:24, :]                                        # (8, H2) final-linear h part

    # ---- CrossNetwork: x_{l+1} = x0 * (x_l . w_l) + b_l + x_l --------------
    x = x0 * y[H1 + 8:H1 + 9, :] + cb[:, 0:1] + x0                 # layer 0 (fused reduction)
    for l in range(1, L):
        xw = jnp.dot(cw, x, preferred_element_type=jnp.float32)[l:l + 1, :]
        x = x0 * xw + cb[:, l:l + 1] + x

    # ---- MLP: Linear -> (folded BN) -> ReLU, x2 (biases folded into dots) --
    h = jnp.maximum(y[0:H1 + 8, :], 0.0)                           # (H1+8, TB); row H1 == 1
    h = jnp.maximum(jnp.dot(packw2_ref[...], h,
                            preferred_element_type=jnp.float32), 0.0)  # (H2, TB)

    # ---- final linear over concat([x_l1, h_l2]) (two dots) + sigmoid -------
    p8 = (jnp.dot(wlx, x, preferred_element_type=jnp.float32)
          + jnp.dot(wlh, h, preferred_element_type=jnp.float32))   # (8, TB), row 0 real
    out_ref[...] = jax.nn.sigmoid(p8[0:1, :] + bl_ref[0, 0])


def dcn_forward_pallas(x_idx, kparams, *, block_b=4096):
    """Fused DCN forward: gather + cross net + MLP + final linear + sigmoid."""
    B, F = x_idx.shape
    block_b = _round_up(max(int(block_b), 128), 128)    # lane-aligned tile guard
    b128 = _round_up(B, 128)
    tb = min(block_b, b128)
    if tb == b128 and b128 >= 256:
        # Split the batch over >= 2 grid steps so both v7x TensorCores run.
        tb = _round_up((b128 + 1) // 2, 128)
    b_pad = _round_up(B, tb)

    idx = x_idx.astype(jnp.int32).T                     # (F, B), raw field-local ids
    if b_pad != B:
        idx = jnp.pad(idx, ((0, 0), (0, b_pad - B)))    # pad with valid id 0

    const = lambda a: pl.BlockSpec(a.shape, lambda i: (0, 0))   # VMEM-resident weights
    out = pl.pallas_call(
        dcn_kernel,
        out_shape=jax.ShapeDtypeStruct((1, b_pad), jnp.float32),
        grid_spec=pltpu.PrefetchScalarGridSpec(
            num_scalar_prefetch=0,
            grid=(b_pad // tb,),
            in_specs=[
                pl.BlockSpec((F, tb), lambda i: (0, i)),          # indices, batch-tiled
                const(kparams["tbl_aug"]),
                const(kparams["packa"]),
                const(kparams["packw2"]),
                const(kparams["wsmall"]),
                const(kparams["cbp"]),
                pl.BlockSpec(memory_space=pltpu.MemorySpace.SMEM),  # scalar final bias
            ],
            out_specs=pl.BlockSpec((1, tb), lambda i: (0, i)),    # lane-dense logits
        ),
        compiler_params=pltpu.CompilerParams(
            dimension_semantics=("parallel",),
            vmem_limit_bytes=32 * 1024 * 1024,
        ),
    )(idx, kparams["tbl_aug"], kparams["packa"], kparams["packw2"],
      kparams["wsmall"], kparams["cbp"], kparams["lin_b"])
    return out[0, :B]


# ------------------------------ host-side glue ----------------------------- #
def make_params(key):
    """Deterministic synthetic parameters matching the PyTorch module shapes."""
    D, H1, H2 = EMBED_OUTPUT_DIM, MLP_DIMS[0], MLP_DIMS[1]
    keys = jax.random.split(key, 12)

    embedding = 0.05 * jax.random.normal(keys[0], (VOCAB, EMBED_DIM), jnp.float32)

    cross_w = 0.1 * jax.random.normal(keys[1], (NUM_CROSS_LAYERS, D), jnp.float32)
    cross_b = 0.1 * jax.random.normal(keys[2], (NUM_CROSS_LAYERS, D), jnp.float32)

    w1 = 0.1 * jax.random.normal(keys[3], (D, H1), jnp.float32)
    b1 = 0.1 * jax.random.normal(keys[4], (H1,), jnp.float32)
    w2 = 0.1 * jax.random.normal(keys[5], (H1, H2), jnp.float32)
    b2 = 0.1 * jax.random.normal(keys[6], (H2,), jnp.float32)

    # Eval-mode BatchNorm1d (running mean=0, var=1, gamma=1, beta=0) folded
    # into the preceding Linear — exact for inference.
    def fold_bn(w, b, gamma, beta, mean, var):
        scale = gamma / jnp.sqrt(var + BN_EPS)
        return w * scale[None, :], (b - mean) * scale + beta

    g1, be1, m1, v1 = jnp.ones(H1), jnp.zeros(H1), jnp.zeros(H1), jnp.ones(H1)
    g2, be2, m2, v2 = jnp.ones(H2), jnp.zeros(H2), jnp.zeros(H2), jnp.ones(H2)
    w1f, b1f = fold_bn(w1, b1, g1, be1, m1, v1)
    w2f, b2f = fold_bn(w2, b2, g2, be2, m2, v2)

    lin_w = 0.1 * jax.random.normal(keys[7], (D + H2, 1), jnp.float32)
    lin_b = 0.1 * jax.random.normal(keys[8], (1,), jnp.float32)

    return {
        "embedding": embedding,
        "cross_w": cross_w, "cross_b": cross_b,
        "mlp_w1": w1f, "mlp_b1": b1f.reshape(1, H1),
        "mlp_w2": w2f, "mlp_b2": b2f.reshape(1, H2),
        "lin_w_x": lin_w[:D, :], "lin_w_h": lin_w[D:, :],
        "lin_b": lin_b.reshape(1, 1),
    }


def prepare_kernel_params(params):
    """Transpose / pack the PyTorch-layout params for the transposed kernel."""
    D, E, F = EMBED_OUTPUT_DIM, EMBED_DIM, len(FIELD_DIMS)
    H1, H2, L = MLP_DIMS[0], MLP_DIMS[1], NUM_CROSS_LAYERS
    offs = _field_offsets(FIELD_DIMS)
    v_pad = _round_up(VOCAB, 128)

    # Block-diagonal, transposed embedding table (bf16): row f*E+e, column j
    # holds emb[j, e] iff vocab id j belongs to field f, so (D, V)@onehot(V,TB)
    # reproduces the flattened embedding.  Row D holds 1/F so its output row
    # is exactly 1.0 (F disjoint hits per column) — used to fold biases.
    emb = params["embedding"]
    tbl = jnp.zeros((D_AUG, v_pad), jnp.float32)
    for f in range(F):
        lo, hi = offs[f], offs[f] + FIELD_DIMS[f]
        tbl = tbl.at[f * E:(f + 1) * E, lo:hi].set(emb[lo:hi, :].T)
    tbl = tbl.at[D, :VOCAB].set(1.0 / F)
    tbl_aug = tbl.astype(jnp.bfloat16)

    # Stacked LHS against augmented x0:
    #   rows 0..H1-1  : [w1^T | b1]      -> h_pre (bias folded)
    #   row  H1       : ones-selector    -> exact ones row (feeds b2 fold)
    #   rows H1+1..+7 : zeros
    #   rows H1+8..   : [cross_w | 0]    -> layer-0 cross reductions
    packa = jnp.zeros((H1 + 16, D_AUG), jnp.float32)
    packa = packa.at[:H1, :D].set(params["mlp_w1"].T)
    packa = packa.at[:H1, D].set(params["mlp_b1"].reshape(H1))
    packa = packa.at[H1, D].set(1.0)
    packa = packa.at[H1 + 8:H1 + 8 + L, :D].set(params["cross_w"])

    # MLP layer 2 with bias folded: [w2^T | b2 | 0] against relu([h_pre; 1; 0]).
    packw2 = jnp.zeros((H2, H1 + 8), jnp.float32)
    packw2 = packw2.at[:, :H1].set(params["mlp_w2"].T)
    packw2 = packw2.at[:, H1].set(params["mlp_b2"].reshape(H2))

    # Small weights packed into one array (rows 0..7 cross_w for layers >= 1,
    # rows 8..15 final-linear x part, rows 16..23 final-linear h part).
    wsm = jnp.zeros((24, max(D, H2)), jnp.float32)
    wsm = wsm.at[:L, :D].set(params["cross_w"])
    wsm = wsm.at[8, :D].set(params["lin_w_x"][:, 0])
    wsm = wsm.at[16, :H2].set(params["lin_w_h"][:, 0])

    cbp = jnp.zeros((D, 8), jnp.float32)
    cbp = cbp.at[:, :L].set(params["cross_b"].T)

    return {
        "tbl_aug": tbl_aug,          # (D_AUG, 128) bf16
        "packa": packa,              # (80, D_AUG)  f32
        "packw2": packw2,            # (H2, H1+8)   f32
        "wsmall": wsm,               # (24, 32)     f32
        "cbp": cbp,                  # (D, 8)       f32
        "lin_b": params["lin_b"],    # (1, 1) -> SMEM
    }


# Pure-JAX reference (PyTorch semantics) for a correctness check.
def dcn_forward_ref(params, x_idx):
    offsets = jnp.asarray(_field_offsets(FIELD_DIMS), dtype=jnp.int32)
    idx = x_idx + offsets[None, :]
    embed_x = params["embedding"][idx].reshape(x_idx.shape[0], EMBED_OUTPUT_DIM)
    x0 = embed_x
    x = x0
    for i in range(NUM_CROSS_LAYERS):
        xw = jnp.sum(x * params["cross_w"][i][None, :], axis=-1, keepdims=True)
        x = x0 * xw + params["cross_b"][i][None, :] + x
    h = jnp.maximum(embed_x @ params["mlp_w1"] + params["mlp_b1"], 0.0)
    h = jnp.maximum(h @ params["mlp_w2"] + params["mlp_b2"], 0.0)
    p = x @ params["lin_w_x"] + h @ params["lin_w_h"] + params["lin_b"][0, 0]
    return jax.nn.sigmoid(p[:, 0])


# TODO(synk): dropout is implemented as inference-mode identity (no RNG masking);
#             BN is folded for eval mode only (re-fold if checkpoint stats differ).

if __name__ == "__main__":
    key = jax.random.PRNGKey(0)
    pkey, xkey = jax.random.split(key)
    params = make_params(pkey)
    kparams = prepare_kernel_params(params)

    # Long tensor of size (batch_size, num_fields): per-field category indices.
    maxvals = jnp.array(FIELD_DIMS, dtype=jnp.int32)
    x_idx = jax.random.randint(xkey, (BATCH, len(FIELD_DIMS)), 0, 10**6,
                               dtype=jnp.int32) % maxvals[None, :]

    out = dcn_forward_pallas(x_idx, kparams)
    jax.block_until_ready(out)

    ref = dcn_forward_ref(params, x_idx)
    assert out.shape == (BATCH,)
    # Tolerance accounts for bf16 MXU passes (default-precision f32 dots and the
    # explicit bf16 gather/bias folds) differing slightly from the exact-gather
    # pure-JAX reference.
    assert jnp.allclose(out, ref, atol=2e-3, rtol=2e-3), (out, ref)

    print("KERNEL_OK")
</pallas_src>

<mosaic_0001>
module attributes {stable_mosaic.version = 11 : i64} {
  func.func @dcn_kernel(%arg0: i32, %arg1: memref<4x128xi32, #tpu.memory_space<vmem>>, %arg2: memref<40x128xbf16, #tpu.memory_space<vmem>>, %arg3: memref<80x40xf32, #tpu.memory_space<vmem>>, %arg4: memref<32x72xf32, #tpu.memory_space<vmem>>, %arg5: memref<24x32xf32, #tpu.memory_space<vmem>>, %arg6: memref<32x8xf32, #tpu.memory_space<vmem>>, %arg7: memref<1x1xf32, #tpu.memory_space<smem>>, %arg8: memref<1x128xf32, #tpu.memory_space<vmem>>) attributes {dimension_semantics = [#tpu.dimension_semantics<parallel>], iteration_bounds = array<i64: 1>, scalar_prefetch = 0 : i64, scratch_operands = 0 : i64, tpu.core_type = #tpu.core_type<tc>, window_params = [{transform_indices = @transform_0, window_bounds = array<i64: 4, 128>}, {pipeline_mode = #tpu.pipeline_mode<synchronous>, transform_indices = @transform_1, window_bounds = array<i64: 40, 128>}, {pipeline_mode = #tpu.pipeline_mode<synchronous>, transform_indices = @transform_2, window_bounds = array<i64: 80, 40>}, {pipeline_mode = #tpu.pipeline_mode<synchronous>, transform_indices = @transform_3, window_bounds = array<i64: 32, 72>}, {pipeline_mode = #tpu.pipeline_mode<synchronous>, transform_indices = @transform_4, window_bounds = array<i64: 24, 32>}, {pipeline_mode = #tpu.pipeline_mode<synchronous>, transform_indices = @transform_5, window_bounds = array<i64: 32, 8>}, {transform_indices = @transform_6, window_bounds = array<i64: 1, 1>}, {transform_indices = @transform_7, window_bounds = array<i64: 1, 128>}]} {
    %c0 = arith.constant 0 : index
    %c0_0 = arith.constant 0 : index
    %0 = vector.load %arg1[%c0, %c0_0] : memref<4x128xi32, #tpu.memory_space<vmem>>, vector<4x128xi32>
    %1 = tpu.iota {dimensions = array<i32: 0>} : vector<128x128xi32>
    %2 = vector.extract_strided_slice %0 {offsets = [0, 0], sizes = [1, 128], strides = [1, 1]} : vector<4x128xi32> to vector<1x128xi32>
    %c0_i32 = arith.constant 0 : i32
    %3 = vector.broadcast %c0_i32 : i32 to vector<1x128xi32>
    %4 = arith.addi %2, %3 : vector<1x128xi32>
    %5 = vector.broadcast %4 : vector<1x128xi32> to vector<128x128xi32>
    %6 = arith.cmpi eq, %1, %5 : vector<128x128xi32>
    %7 = vector.extract_strided_slice %0 {offsets = [1, 0], sizes = [1, 128], strides = [1, 1]} : vector<4x128xi32> to vector<1x128xi32>
    %c10_i32 = arith.constant 10 : i32
    %8 = vector.broadcast %c10_i32 : i32 to vector<1x128xi32>
    %9 = arith.addi %7, %8 : vector<1x128xi32>
    %10 = vector.broadcast %9 : vector<1x128xi32> to vector<128x128xi32>
    %11 = arith.cmpi eq, %1, %10 : vector<128x128xi32>
    %12 = arith.ori %6, %11 : vector<128x128xi1>
    %13 = vector.extract_strided_slice %0 {offsets = [2, 0], sizes = [1, 128], strides = [1, 1]} : vector<4x128xi32> to vector<1x128xi32>
    %c30_i32 = arith.constant 30 : i32
    %14 = vector.broadcast %c30_i32 : i32 to vector<1x128xi32>
    %15 = arith.addi %13, %14 : vector<1x128xi32>
    %16 = vector.broadcast %15 : vector<1x128xi32> to vector<128x128xi32>
    %17 = arith.cmpi eq, %1, %16 : vector<128x128xi32>
    %18 = arith.ori %12, %17 : vector<128x128xi1>
    %19 = vector.extract_strided_slice %0 {offsets = [3, 0], sizes = [1, 128], strides = [1, 1]} : vector<4x128xi32> to vector<1x128xi32>
    %c60_i32 = arith.constant 60 : i32
    %20 = vector.broadcast %c60_i32 : i32 to vector<1x128xi32>
    %21 = arith.addi %19, %20 : vector<1x128xi32>
    %22 = vector.broadcast %21 : vector<1x128xi32> to vector<128x128xi32>
    %23 = arith.cmpi eq, %1, %22 : vector<128x128xi32>
    %24 = arith.ori %18, %23 : vector<128x128xi1>
    %25 = arith.extui %24 : vector<128x128xi1> to vector<128x128xi32>
    %26 = arith.sitofp %25 : vector<128x128xi32> to vector<128x128xf32>
    %27 = arith.truncf %26 : vector<128x128xf32> to vector<128x128xbf16>
    %c0_1 = arith.constant 0 : index
    %c0_2 = arith.constant 0 : index
    %28 = vector.load %arg2[%c0_1, %c0_2] : memref<40x128xbf16, #tpu.memory_space<vmem>>, vector<40x128xbf16>
    %cst = arith.constant dense<0.000000e+00> : vector<40x128xf32>
    %29 = tpu.matmul %28, %27, %cst {dimension_numbers = #tpu.dot_dimension_numbers<[1], [0], [0], [1], [0, 0, 1, 1], [], []>} : vector<40x128xbf16>, vector<128x128xbf16>, vector<40x128xf32> -> vector<40x128xf32>
    %c0_3 = arith.constant 0 : index
    %c0_4 = arith.constant 0 : index
    %30 = vector.load %arg3[%c0_3, %c0_4] : memref<80x40xf32, #tpu.memory_space<vmem>>, vector<80x40xf32>
    %cst_5 = arith.constant dense<0.000000e+00> : vector<80x128xf32>
    %31 = tpu.matmul %30, %29, %cst_5 {dimension_numbers = #tpu.dot_dimension_numbers<[1], [0], [0], [1], [0, 0, 1, 1], [], []>} : vector<80x40xf32>, vector<40x128xf32>, vector<80x128xf32> -> vector<80x128xf32>
    %32 = vector.extract_strided_slice %29 {offsets = [0, 0], sizes = [32, 128], strides = [1, 1]} : vector<40x128xf32> to vector<32x128xf32>
    %c0_6 = arith.constant 0 : index
    %c0_7 = arith.constant 0 : index
    %33 = vector.load %arg6[%c0_6, %c0_7] : memref<32x8xf32, #tpu.memory_space<vmem>>, vector<32x8xf32>
    %c0_8 = arith.constant 0 : index
    %c0_9 = arith.constant 0 : index
    %34 = vector.load %arg5[%c0_8, %c0_9] : memref<24x32xf32, #tpu.memory_space<vmem>>, vector<8x32xf32>
    %c8 = arith.constant 8 : index
    %c0_10 = arith.constant 0 : index
    %35 = vector.load %arg5[%c8, %c0_10] : memref<24x32xf32, #tpu.memory_space<vmem>>, vector<8x32xf32>
    %c16 = arith.constant 16 : index
    %c0_11 = arith.constant 0 : index
    %36 = vector.load %arg5[%c16, %c0_11] : memref<24x32xf32, #tpu.memory_space<vmem>>, vector<8x32xf32>
    %37 = vector.extract_strided_slice %31 {offsets = [72, 0], sizes = [1, 128], strides = [1, 1]} : vector<80x128xf32> to vector<1x128xf32>
    %38 = vector.broadcast %37 : vector<1x128xf32> to vector<32x128xf32>
    %39 = arith.mulf %32, %38 : vector<32x128xf32>
    %40 = vector.extract_strided_slice %33 {offsets = [0, 0], sizes = [32, 1], strides = [1, 1]} : vector<32x8xf32> to vector<32x1xf32>
    %41 = vector.broadcast %40 : vector<32x1xf32> to vector<32x128xf32>
    %42 = arith.addf %39, %41 : vector<32x128xf32>
    %43 = arith.addf %42, %32 : vector<32x128xf32>
    %cst_12 = arith.constant dense<0.000000e+00> : vector<8x128xf32>
    %44 = tpu.matmul %34, %43, %cst_12 {dimension_numbers = #tpu.dot_dimension_numbers<[1], [0], [0], [1], [0, 0, 1, 1], [], []>} : vector<8x32xf32>, vector<32x128xf32>, vector<8x128xf32> -> vector<8x128xf32>
    %45 = vector.extract_strided_slice %44 {offsets = [1, 0], sizes = [1, 128], strides = [1, 1]} : vector<8x128xf32> to vector<1x128xf32>
    %46 = vector.broadcast %45 : vector<1x128xf32> to vector<32x128xf32>
    %47 = arith.mulf %32, %46 : vector<32x128xf32>
    %48 = vector.extract_strided_slice %33 {offsets = [0, 1], sizes = [32, 1], strides = [1, 1]} : vector<32x8xf32> to vector<32x1xf32>
    %49 = vector.broadcast %48 : vector<32x1xf32> to vector<32x128xf32>
    %50 = arith.addf %47, %49 : vector<32x128xf32>
    %51 = arith.addf %50, %43 : vector<32x128xf32>
    %cst_13 = arith.constant dense<0.000000e+00> : vector<8x128xf32>
    %52 = tpu.matmul %34, %51, %cst_13 {dimension_numbers = #tpu.dot_dimension_numbers<[1], [0], [0], [1], [0, 0, 1, 1], [], []>} : vector<8x32xf32>, vector<32x128xf32>, vector<8x128xf32> -> vector<8x128xf32>
    %53 = vector.extract_strided_slice %52 {offsets = [2, 0], sizes = [1, 128], strides = [1, 1]} : vector<8x128xf32> to vector<1x128xf32>
    %54 = vector.broadcast %53 : vector<1x128xf32> to vector<32x128xf32>
    %55 = arith.mulf %32, %54 : vector<32x128xf32>
    %56 = vector.extract_strided_slice %33 {offsets = [0, 2], sizes = [32, 1], strides = [1, 1]} : vector<32x8xf32> to vector<32x1xf32>
    %57 = vector.broadcast %56 : vector<32x1xf32> to vector<32x128xf32>
    %58 = arith.addf %55, %57 : vector<32x128xf32>
    %59 = arith.addf %58, %51 : vector<32x128xf32>
    %60 = vector.extract_strided_slice %31 {offsets = [0, 0], sizes = [72, 128], strides = [1, 1]} : vector<80x128xf32> to vector<72x128xf32>
    %cst_14 = arith.constant 0.000000e+00 : f32
    %61 = vector.broadcast %cst_14 : f32 to vector<72x128xf32>
    %62 = arith.maximumf %60, %61 : vector<72x128xf32>
    %c0_15 = arith.constant 0 : index
    %c0_16 = arith.constant 0 : index
    %63 = vector.load %arg4[%c0_15, %c0_16] : memref<32x72xf32, #tpu.memory_space<vmem>>, vector<32x72xf32>
    %cst_17 = arith.constant dense<0.000000e+00> : vector<32x128xf32>
    %64 = tpu.matmul %63, %62, %cst_17 {dimension_numbers = #tpu.dot_dimension_numbers<[1], [0], [0], [1], [0, 0, 1, 1], [], []>} : vector<32x72xf32>, vector<72x128xf32>, vector<32x128xf32> -> vector<32x128xf32>
    %cst_18 = arith.constant 0.000000e+00 : f32
    %65 = vector.broadcast %cst_18 : f32 to vector<32x128xf32>
    %66 = arith.maximumf %64, %65 : vector<32x128xf32>
    %cst_19 = arith.constant dense<0.000000e+00> : vector<8x128xf32>
    %67 = tpu.matmul %35, %59, %cst_19 {dimension_numbers = #tpu.dot_dimension_numbers<[1], [0], [0], [1], [0, 0, 1, 1], [], []>} : vector<8x32xf32>, vector<32x128xf32>, vector<8x128xf32> -> vector<8x128xf32>
    %cst_20 = arith.constant dense<0.000000e+00> : vector<8x128xf32>
    %68 = tpu.matmul %36, %66, %cst_20 {dimension_numbers = #tpu.dot_dimension_numbers<[1], [0], [0], [1], [0, 0, 1, 1], [], []>} : vector<8x32xf32>, vector<32x128xf32>, vector<8x128xf32> -> vector<8x128xf32>
    %69 = arith.addf %67, %68 : vector<8x128xf32>
    %70 = vector.extract_strided_slice %69 {offsets = [0, 0], sizes = [1, 128], strides = [1, 1]} : vector<8x128xf32> to vector<1x128xf32>
    %c0_21 = arith.constant 0 : index
    %c0_22 = arith.constant 0 : index
    %71 = memref.load %arg7[%c0_21, %c0_22] : memref<1x1xf32, #tpu.memory_space<smem>>
    %72 = vector.broadcast %71 : f32 to vector<1x128xf32>
    %73 = arith.addf %70, %72 : vector<1x128xf32>
    %74 = arith.negf %73 : vector<1x128xf32>
    %75 = math.exp %74 : vector<1x128xf32>
    %cst_23 = arith.constant 1.000000e+00 : f32
    %76 = vector.broadcast %cst_23 : f32 to vector<1x128xf32>
    %77 = arith.addf %76, %75 : vector<1x128xf32>
    %78 = arith.divf %76, %77 : vector<1x128xf32>
    %c0_24 = arith.constant 0 : index
    %c0_25 = arith.constant 0 : index
    %79 = vector.load %arg8[%c0_24, %c0_25] : memref<1x128xf32, #tpu.memory_space<vmem>>, vector<1x128xf32>
    tpu.vector_store %arg8[%c0_24, %c0_25], %78 {strides = array<i32>} : memref<1x128xf32, #tpu.memory_space<vmem>>, vector<1x128xf32>,
    return
  }
  func.func @transform_0(%arg0: i32) -> (i32, i32) {
    %c0_i32 = arith.constant 0 : i32
    %c0_i32_0 = arith.constant 0 : i32
    return %c0_i32, %arg0 : i32, i32
  }
  func.func @transform_1(%arg0: i32) -> (i32, i32) {
    %c0_i32 = arith.constant 0 : i32
    %c0_i32_0 = arith.constant 0 : i32
    %c0_i32_1 = arith.constant 0 : i32
    return %c0_i32, %c0_i32_0 : i32, i32
  }
  func.func @transform_2(%arg0: i32) -> (i32, i32) {
    %c0_i32 = arith.constant 0 : i32
    %c0_i32_0 = arith.constant 0 : i32
    %c0_i32_1 = arith.constant 0 : i32
    return %c0_i32, %c0_i32_0 : i32, i32
  }
  func.func @transform_3(%arg0: i32) -> (i32, i32) {
    %c0_i32 = arith.constant 0 : i32
    %c0_i32_0 = arith.constant 0 : i32
    %c0_i32_1 = arith.constant 0 : i32
    return %c0_i32, %c0_i32_0 : i32, i32
  }
  func.func @transform_4(%arg0: i32) -> (i32, i32) {
    %c0_i32 = arith.constant 0 : i32
    %c0_i32_0 = arith.constant 0 : i32
    %c0_i32_1 = arith.constant 0 : i32
    return %c0_i32, %c0_i32_0 : i32, i32
  }
  func.func @transform_5(%arg0: i32) -> (i32, i32) {
    %c0_i32 = arith.constant 0 : i32
    %c0_i32_0 = arith.constant 0 : i32
    %c0_i32_1 = arith.constant 0 : i32
    return %c0_i32, %c0_i32_0 : i32, i32
  }
  func.func @transform_6(%arg0: i32) -> (i32, i32) {
    %c0_i32 = arith.constant 0 : i32
    %c0_i32_0 = arith.constant 0 : i32
    %c0_i32_1 = arith.constant 0 : i32
    return %c0_i32, %c0_i32_0 : i32, i32
  }
  func.func @transform_7(%arg0: i32) -> (i32, i32) {
    %c0_i32 = arith.constant 0 : i32
    %c0_i32_0 = arith.constant 0 : i32
    return %c0_i32, %arg0 : i32, i32
  }
}

</mosaic_0001>

<llo_original>
// kernel: tpu_custom_call.1
$region0: #{tpu_custom_call.1}
  #allocation0 [shape = 'u32[]', space=smem, size = 0x4, offset = 0x4, fixed_abs, tag = 'smem constant byte address 0x4 - core index']
  #allocation1 [shape = 'u32[144,128]{1,0:T(1,128)}', space=vmem, size = 0x12000, scoped, tag = 'internal scratch']
  #allocation2 [shape = 'f32[1,1]{1,0:T(1,128)S(6)}', space=smem, size = 0x200, scoped, tag = 'scoped memory for tpu_custom_call.1']
  %s0 = inlined_call_operand.vmem [shape: s32[4,128], index: 0, kind: input, shape index: {}]
  %s1 = inlined_call_operand.vmem [shape: bf16[40,128], index: 1, kind: input, shape index: {}]
  %s2 = inlined_call_operand.vmem [shape: f32[80,40], index: 2, kind: input, shape index: {}]
  %s3 = inlined_call_operand.vmem [shape: f32[32,72], index: 3, kind: input, shape index: {}]
  %s4 = inlined_call_operand.vmem [shape: f32[24,32], index: 4, kind: input, shape index: {}]
  %s5 = inlined_call_operand.vmem [shape: f32[32,8], index: 5, kind: input, shape index: {}]
  %s6 = inlined_call_operand.<no memory space> [shape: f32[1,1], index: 6, kind: input, shape index: {}]
  %s7 = inlined_call_operand.hbm [shape: f32[1,128], index: 7, kind: output, shape index: {}]
  %s8 = sld [smem:[#allocation0]]
  $region38: #{tpu_custom_call.1} parent=0
    _
  %s10 = ssub.s32 1, %s8
  %s11 = scalar_select 0, %s10, %s8
  %12 = sst [smem:[#allocation2]] %s6
  $region1: #{tpu_custom_call.1} parent=0
    #allocation3 [shape = 'u8[512]{0}', space=vmem, size = 0x400, scoped, tag = 'output window, operand 0, single buffered']
    #allocation4 [shape = 's32[1]{0}', space=sflag, size = 0x4, scoped, tag = 'scoped memory for tpu_custom_call.1']
    %13 = vsyncpa [#allocation4], 0
    // Predicated region
    $region2: #{tpu_custom_call.1} parent=1 // pred_check
      _
    $region3: #{tpu_custom_call.1} parent=1 // pred_check_branch
      %15 = sbr.rel (0) target = $region5
    $region4: #{tpu_custom_call.1} parent=1 // pred_region
      _
    $region5: #{tpu_custom_call.1} parent=1 // pred_fallthru
      _
    // Predicated region
    $region6: #{tpu_custom_call.1} parent=1 // pred_check
      _
    $region7: #{tpu_custom_call.1} parent=1 // pred_check_branch
      %17 = sbr.rel (0) target = $region9
    $region8: #{tpu_custom_call.1} parent=1 // pred_region
      _
    $region9: #{tpu_custom_call.1} parent=1 // pred_fallthru
      _
    // Predicated region
    $region10: #{tpu_custom_call.1} parent=1 // pred_check
      _
    $region11: #{tpu_custom_call.1} parent=1 // pred_check_branch
      %19 = sbr.rel (0) target = $region13
    $region12: #{tpu_custom_call.1} parent=1 // pred_region
      _
    $region13: #{tpu_custom_call.1} parent=1 // pred_fallthru
      _
    // Predicated region
    $region14: #{tpu_custom_call.1} parent=1 // pred_check
      _
    $region15: #{tpu_custom_call.1} parent=1 // pred_check_branch
      %21 = sbr.rel (0) target = $region17
    $region16: #{tpu_custom_call.1} parent=1 // pred_region
      _
    $region17: #{tpu_custom_call.1} parent=1 // pred_fallthru
      _
    // Predicated region
    $region18: #{tpu_custom_call.1} parent=1 // pred_check
      _
    $region19: #{tpu_custom_call.1} parent=1 // pred_check_branch
      %23 = sbr.rel (0) target = $region21
    $region20: #{tpu_custom_call.1} parent=1 // pred_region
      _
    $region21: #{tpu_custom_call.1} parent=1 // pred_fallthru
      _
    // Predicated region
    $region22: #{tpu_custom_call.1} parent=1 // pred_check
      _
    $region23: #{tpu_custom_call.1} parent=1 // pred_check_branch
      %25 = sbr.rel (0) target = $region25
    $region24: #{tpu_custom_call.1} parent=1 // pred_region
      _
    $region25: #{tpu_custom_call.1} parent=1 // pred_fallthru
      _
    // Predicated region
    $region26: #{tpu_custom_call.1} parent=1 // pred_check
      _
    $region27: #{tpu_custom_call.1} parent=1 // pred_check_branch
      %27 = sbr.rel (0) target = $region29
    $region28: #{tpu_custom_call.1} parent=1 // pred_region
      _
    $region29: #{tpu_custom_call.1} parent=1 // pred_fallthru
      _
    %v29 = vld [vmem:[%s0] sm:$0xf]
    %v30 = vlaneseq
    %v31 = vshrl.u32 %v30, 7
    %v32 = vadd.s32 %v31, 8
    %v33 = vadd.s32 %v31, 16
    %v34 = vadd.s32 %v31, 24
    %v35 = vadd.s32 %v31, 32
    %v36 = vadd.s32 %v31, 40
    %v37 = vadd.s32 %v31, 48
    %v38 = vadd.s32 %v31, 56
    %v39 = vadd.s32 %v31, 64
    %v40 = vadd.s32 %v31, 72
    %v41 = vadd.s32 %v31, 80
    %v42 = vadd.s32 %v31, 88
    %v43 = vadd.s32 %v31, 96
    %v44 = vadd.s32 %v31, 104
    %v45 = vadd.s32 %v31, 112
    %v46 = vadd.s32 %v31, 120
    %v47 = vlaneseq
    %v48 = vshrl.u32 %v47, 7
    %v49 = vsub.s32 0, %v48
    %v50 = vrot.slane %v29, %v49
    %vm51 = vcmp.eq.s32.totalorder %v31, %v50
    %vm52 = vcmp.eq.s32.totalorder %v32, %v50
    %vm53 = vcmp.eq.s32.totalorder %v33, %v50
    %vm54 = vcmp.eq.s32.totalorder %v34, %v50
    %vm55 = vcmp.eq.s32.totalorder %v35, %v50
    %vm56 = vcmp.eq.s32.totalorder %v36, %v50
    %vm57 = vcmp.eq.s32.totalorder %v37, %v50
    %vm58 = vcmp.eq.s32.totalorder %v38, %v50
    %vm59 = vcmp.eq.s32.totalorder %v39, %v50
    %vm60 = vcmp.eq.s32.totalorder %v40, %v50
    %vm61 = vcmp.eq.s32.totalorder %v41, %v50
    %vm62 = vcmp.eq.s32.totalorder %v42, %v50
    %vm63 = vcmp.eq.s32.totalorder %v43, %v50
    %vm64 = vcmp.eq.s32.totalorder %v44, %v50
    %vm65 = vcmp.eq.s32.totalorder %v45, %v50
    %vm66 = vcmp.eq.s32.totalorder %v46, %v50
    %v67 = vadd.s32 %v29, 10
    %v68 = vlaneseq
    %v69 = vshrl.u32 %v68, 7
    %v70 = vsub.s32 1, %v69
    %v71 = vrot.slane %v67, %v70
    %vm72 = vcmp.eq.s32.totalorder %v31, %v71
    %vm73 = vcmp.eq.s32.totalorder %v32, %v71
    %vm74 = vcmp.eq.s32.totalorder %v33, %v71
    %vm75 = vcmp.eq.s32.totalorder %v34, %v71
    %vm76 = vcmp.eq.s32.totalorder %v35, %v71
    %vm77 = vcmp.eq.s32.totalorder %v36, %v71
    %vm78 = vcmp.eq.s32.totalorder %v37, %v71
    %vm79 = vcmp.eq.s32.totalorder %v38, %v71
    %vm80 = vcmp.eq.s32.totalorder %v39, %v71
    %vm81 = vcmp.eq.s32.totalorder %v40, %v71
    %vm82 = vcmp.eq.s32.totalorder %v41, %v71
    %vm83 = vcmp.eq.s32.totalorder %v42, %v71
    %vm84 = vcmp.eq.s32.totalorder %v43, %v71
    %vm85 = vcmp.eq.s32.totalorder %v44, %v71
    %vm86 = vcmp.eq.s32.totalorder %v45, %v71
    %vm87 = vcmp.eq.s32.totalorder %v46, %v71
    %vm88 = vmor %vm51, %vm72
    %vm89 = vmor %vm52, %vm73
    %vm90 = vmor %vm53, %vm74
    %vm91 = vmor %vm54, %vm75
    %vm92 = vmor %vm55, %vm76
    %vm93 = vmor %vm56, %vm77
    %vm94 = vmor %vm57, %vm78
    %vm95 = vmor %vm58, %vm79
    %vm96 = vmor %vm59, %vm80
    %vm97 = vmor %vm60, %vm81
    %vm98 = vmor %vm61, %vm82
    %vm99 = vmor %vm62, %vm83
    %vm100 = vmor %vm63, %vm84
    %vm101 = vmor %vm64, %vm85
    %vm102 = vmor %vm65, %vm86
    %vm103 = vmor %vm66, %vm87
    %v104 = vadd.s32 %v29, 30
    %v105 = vlaneseq
    %v106 = vshrl.u32 %v105, 7
    %v107 = vsub.s32 2, %v106
    %v108 = vrot.slane %v104, %v107
    %vm109 = vcmp.eq.s32.totalorder %v31, %v108
    %vm110 = vcmp.eq.s32.totalorder %v32, %v108
    %vm111 = vcmp.eq.s32.totalorder %v33, %v108
    %vm112 = vcmp.eq.s32.totalorder %v34, %v108
    %vm113 = vcmp.eq.s32.totalorder %v35, %v108
    %vm114 = vcmp.eq.s32.totalorder %v36, %v108
    %vm115 = vcmp.eq.s32.totalorder %v37, %v108
    %vm116 = vcmp.eq.s32.totalorder %v38, %v108
    %vm117 = vcmp.eq.s32.totalorder %v39, %v108
    %vm118 = vcmp.eq.s32.totalorder %v40, %v108
    %vm119 = vcmp.eq.s32.totalorder %v41, %v108
    %vm120 = vcmp.eq.s32.totalorder %v42, %v108
    %vm121 = vcmp.eq.s32.totalorder %v43, %v108
    %vm122 = vcmp.eq.s32.totalorder %v44, %v108
    %vm123 = vcmp.eq.s32.totalorder %v45, %v108
    %vm124 = vcmp.eq.s32.totalorder %v46, %v108
    %vm125 = vmor %vm88, %vm109
    %vm126 = vmor %vm89, %vm110
    %vm127 = vmor %vm90, %vm111
    %vm128 = vmor %vm91, %vm112
    %vm129 = vmor %vm92, %vm113
    %vm130 = vmor %vm93, %vm114
    %vm131 = vmor %vm94, %vm115
    %vm132 = vmor %vm95, %vm116
    %vm133 = vmor %vm96, %vm117
    %vm134 = vmor %vm97, %vm118
    %vm135 = vmor %vm98, %vm119
    %vm136 = vmor %vm99, %vm120
    %vm137 = vmor %vm100, %vm121
    %vm138 = vmor %vm101, %vm122
    %vm139 = vmor %vm102, %vm123
    %vm140 = vmor %vm103, %vm124
    %v141 = vadd.s32 %v29, 60
    %v142 = vlaneseq
    %v143 = vshrl.u32 %v142, 7
    %v144 = vsub.s32 3, %v143
    %v145 = vrot.slane %v141, %v144
    %vm146 = vcmp.eq.s32.totalorder %v31, %v145
    %vm147 = vcmp.eq.s32.totalorder %v32, %v145
    %vm148 = vcmp.eq.s32.totalorder %v33, %v145
    %vm149 = vcmp.eq.s32.totalorder %v34, %v145
    %vm150 = vcmp.eq.s32.totalorder %v35, %v145
    %vm151 = vcmp.eq.s32.totalorder %v36, %v145
    %vm152 = vcmp.eq.s32.totalorder %v37, %v145
    %vm153 = vcmp.eq.s32.totalorder %v38, %v145
    %vm154 = vcmp.eq.s32.totalorder %v39, %v145
    %vm155 = vcmp.eq.s32.totalorder %v40, %v145
    %vm156 = vcmp.eq.s32.totalorder %v41, %v145
    %vm157 = vcmp.eq.s32.totalorder %v42, %v145
    %vm158 = vcmp.eq.s32.totalorder %v43, %v145
    %vm159 = vcmp.eq.s32.totalorder %v44, %v145
    %vm160 = vcmp.eq.s32.totalorder %v45, %v145
    %vm161 = vcmp.eq.s32.totalorder %v46, %v145
    %vm162 = vmor %vm125, %vm146
    %vm163 = vmor %vm126, %vm147
    %vm164 = vmor %vm127, %vm148
    %vm165 = vmor %vm128, %vm149
    %vm166 = vmor %vm129, %vm150
    %vm167 = vmor %vm130, %vm151
    %vm168 = vmor %vm131, %vm152
    %vm169 = vmor %vm132, %vm153
    %vm170 = vmor %vm133, %vm154
    %vm171 = vmor %vm134, %vm155
    %vm172 = vmor %vm135, %vm156
    %vm173 = vmor %vm136, %vm157
    %vm174 = vmor %vm137, %vm158
    %vm175 = vmor %vm138, %vm159
    %vm176 = vmor %vm139, %vm160
    %vm177 = vmor %vm140, %vm161
    %v178 = vsel %vm162, 1, 0
    %v179 = vsel %vm163, 1, 0
    %v180 = vsel %vm164, 1, 0
    %v181 = vsel %vm165, 1, 0
    %v182 = vsel %vm166, 1, 0
    %v183 = vsel %vm167, 1, 0
    %v184 = vsel %vm168, 1, 0
    %v185 = vsel %vm169, 1, 0
    %v186 = vsel %vm170, 1, 0
    %v187 = vsel %vm171, 1, 0
    %v188 = vsel %vm172, 1, 0
    %v189 = vsel %vm173, 1, 0
    %v190 = vsel %vm174, 1, 0
    %v191 = vsel %vm175, 1, 0
    %v192 = vsel %vm176, 1, 0
    %v193 = vsel %vm177, 1, 0
    %v194 = vcvt.s32.f32 %v178
    %v195 = vcvt.s32.f32 %v179
    %v196 = vcvt.s32.f32 %v180
    %v197 = vcvt.s32.f32 %v181
    %v198 = vcvt.s32.f32 %v182
    %v199 = vcvt.s32.f32 %v183
    %v200 = vcvt.s32.f32 %v184
    %v201 = vcvt.s32.f32 %v185
    %v202 = vcvt.s32.f32 %v186
    %v203 = vcvt.s32.f32 %v187
    %v204 = vcvt.s32.f32 %v188
    %v205 = vcvt.s32.f32 %v189
    %v206 = vcvt.s32.f32 %v190
    %v207 = vcvt.s32.f32 %v191
    %v208 = vcvt.s32.f32 %v192
    %v209 = vcvt.s32.f32 %v193
    %v210 = vpack.c.bf16 %v195, %v194
    %v211 = vpack.c.bf16 %v197, %v196
    %v212 = vpack.c.bf16 %v199, %v198
    %v213 = vpack.c.bf16 %v201, %v200
    %v214 = vpack.c.bf16 %v203, %v202
    %v215 = vpack.c.bf16 %v205, %v204
    %v216 = vpack.c.bf16 %v207, %v206
    %v217 = vpack.c.bf16 %v209, %v208
    %v218 = vld [vmem:[%s1] sm:$0xf]
    %v219 = vld [vmem:[%s1 + $0x4] sm:$0xf]
    %v220 = vld [vmem:[%s1 + $0x8] sm:$0xf]
    %v221 = vld [vmem:[%s1 + $0xc] sm:$0xf]
    %v222 = vld [vmem:[%s1 + $0x10] sm:$0xf]
    %v228 = vunpack.c.l.b16 %v218
    %v229 = vunpack.c.l.b16 %v219
    %v230 = vunpack.c.l.b16 %v220
    %v231 = vunpack.c.l.b16 %v221
    %v232 = vunpack.c.l.b16 %v222
    %v233 = vpack.c.b16 %v229, %v228
    %v234 = vpack.c.b16 %v231, %v230
    %v235 = vpack.c.b16 %v232, %v232
    %239 = vmatprep.subr.bf16.mxu0 0
    %240 = vmatpush1.bf16.msra.mxu0 %v210
    %241 = vmatprep.subr.bf16.mxu0 0
    %242 = vmatpush1.bf16.msra.mxu0 %v211
    %243 = vmatprep.subr.bf16.mxu0 0
    %244 = vmatpush1.bf16.msra.mxu0 %v212
    %245 = vmatprep.subr.bf16.mxu0 0
    %246 = vmatpush1.bf16.msra.mxu0 %v213
    %247 = vmatprep.subr.bf16.mxu0 0
    %248 = vmatpush1.bf16.msra.mxu0 %v214
    %249 = vmatprep.subr.bf16.mxu0 0
    %250 = vmatpush1.bf16.msra.mxu0 %v215
    %251 = vmatprep.subr.bf16.mxu0 0
    %252 = vmatpush1.bf16.msra.mxu0 %v216
    %253 = vmatprep.subr.bf16.mxu0 0
    %254 = vmatpush1.bf16.msra.mxu0 %v217
    %255 = vmatprep.subr.bf16.mxu0 0
    %256 = vmatpush1.bf16.msra.mxu0 0
    %257 = vmatprep.subr.bf16.mxu0 0
    %258 = vmatpush1.bf16.msra.mxu0 0
    %259 = vmatprep.subr.bf16.mxu0 0
    %260 = vmatpush1.bf16.msra.mxu0 0
    %261 = vmatprep.subr.bf16.mxu0 0
    %262 = vmatpush1.bf16.msra.mxu0 0
    %263 = vmatprep.subr.bf16.mxu0 0
    %264 = vmatpush1.bf16.msra.mxu0 0
    %265 = vmatprep.subr.bf16.mxu0 0
    %266 = vmatpush1.bf16.msra.mxu0 0
    %267 = vmatprep.subr.bf16.mxu0 0
    %268 = vmatpush1.bf16.msra.mxu0 0
    %269 = vmatprep.subr.bf16.mxu0 0
    %270 = vmatpush1.bf16.msra.mxu0 0
    %271 = vmatprep.mubr.bf16.mxu0 0
    %272 = vmatmul.mubr.bf16.gmra.mrb[0].mxu0 %v233
    %v273 = vpop.f32.mrb[0].mxu0
    %v274 = vadd.f32 0.0, %v273
    %v275 = vpop.f32.mrb[0].mxu0
    %v276 = vpop.f32.mrb[0].mxu0
    %v277 = vadd.f32 0.0, %v276
    %v278 = vpop.f32.mrb[0].mxu0
    %279 = vmatprep.mubr.bf16.mxu0 0
    %280 = vmatmul.mubr.bf16.gmra.mrb[0].mxu0 %v234
    %v281 = vpop.f32.mrb[0].mxu0
    %v282 = vadd.f32 0.0, %v281
    %v283 = vpop.f32.mrb[0].mxu0
    %v284 = vpop.f32.mrb[0].mxu0
    %v285 = vadd.f32 0.0, %v284
    %v286 = vpop.f32.mrb[0].mxu0
    %287 = vmatprep.mubr.bf16.mxu0 0
    %288 = vmatmul.mubr.bf16.gmra.mrb[0].mxu0 %v235
    %v289 = vpop.f32.mrb[0].mxu0
    %v290 = vadd.f32 0.0, %v289
    %v291 = vpop.f32.mrb[0].mxu0
    %v292 = vpop.f32.mrb[0].mxu0
    %v293 = vpop.f32.mrb[0].mxu0
    %294 = vdwg.mxu0
    %v295 = vld [vmem:[%s2] sm:$0xff]
    %v296 = vld [vmem:[%s2 + $0x8] sm:$0xff]
    %v297 = vld [vmem:[%s2 + $0x10] sm:$0xff]
    %v298 = vld [vmem:[%s2 + $0x18] sm:$0xff]
    %v299 = vld [vmem:[%s2 + $0x20] sm:$0xff]
    %v300 = vld [vmem:[%s2 + $0x28] sm:$0xff]
    %v301 = vld [vmem:[%s2 + $0x30] sm:$0xff]
    %v302 = vld [vmem:[%s2 + $0x38] sm:$0xff]
    %v303 = vld [vmem:[%s2 + $0x40] sm:$0xff]
    %v304 = vld [vmem:[%s2 + $0x48] sm:$0xff]
    %vm305 = vcmask 326656
    %v307 = vsel %vm305, %v295, 0
    %v310 = vsel %vm305, %v296, 0
    %v313 = vsel %vm305, %v297, 0
    %v316 = vsel %vm305, %v298, 0
    %v319 = vsel %vm305, %v299, 0
    %v322 = vsel %vm305, %v300, 0
    %v325 = vsel %vm305, %v301, 0
    %v328 = vsel %vm305, %v302, 0
    %v331 = vsel %vm305, %v303, 0
    %v334 = vsel %vm305, %v304, 0
    %336 = vmatprep.subr.mxu0 0.0
    %337 = vmatpush1.msra.mxu0 %v274
    %338 = vmatprep.subr.mxu0 0.0
    %339 = vmatpush1.msra.mxu0 %v277
    %340 = vmatprep.subr.mxu0 0.0
    %341 = vmatpush1.msra.mxu0 %v282
    %342 = vmatprep.subr.mxu0 0.0
    %343 = vmatpush1.msra.mxu0 %v285
    %344 = vmatprep.subr.mxu0 0.0
    %345 = vmatpush1.msra.mxu0 %v290
    %346 = vmatprep.subr.mxu0 0.0
    %347 = vmatpush1.msra.mxu0 0.0
    %348 = vmatprep.subr.mxu0 0.0
    %349 = vmatpush1.msra.mxu0 0.0
    %350 = vmatprep.subr.mxu0 0.0
    %351 = vmatpush1.msra.mxu0 0.0
    %352 = vmatprep.subr.mxu0 0.0
    %353 = vmatpush1.msra.mxu0 0.0
    %354 = vmatprep.subr.mxu0 0.0
    %355 = vmatpush1.msra.mxu0 0.0
    %356 = vmatprep.subr.mxu0 0.0
    %357 = vmatpush1.msra.mxu0 0.0
    %358 = vmatprep.subr.mxu0 0.0
    %359 = vmatpush1.msra.mxu0 0.0
    %360 = vmatprep.subr.mxu0 0.0
    %361 = vmatpush1.msra.mxu0 0.0
    %362 = vmatprep.subr.mxu0 0.0
    %363 = vmatpush1.msra.mxu0 0.0
    %364 = vmatprep.subr.mxu0 0.0
    %365 = vmatpush1.msra.mxu0 0.0
    %366 = vmatprep.subr.mxu0 0.0
    %367 = vmatpush1.msra.mxu0 0.0
    %368 = vmatprep.subr.mxu0 0.0
    %369 = vmatpush1.msra.mxu0 0.0
    %370 = vmatprep.subr.mxu0 0.0
    %371 = vmatpush1.msra.mxu0 0.0
    %372 = vmatprep.subr.mxu0 0.0
    %373 = vmatpush1.msra.mxu0 0.0
    %374 = vmatprep.subr.mxu0 0.0
    %375 = vmatpush1.msra.mxu0 0.0
    %376 = vmatprep.subr.mxu0 0.0
    %377 = vmatpush1.msra.mxu0 0.0
    %378 = vmatprep.subr.mxu0 0.0
    %379 = vmatpush1.msra.mxu0 0.0
    %380 = vmatprep.subr.mxu0 0.0
    %381 = vmatpush1.msra.mxu0 0.0
    %382 = vmatprep.subr.mxu0 0.0
    %383 = vmatpush1.msra.mxu0 0.0
    %384 = vmatprep.subr.mxu0 0.0
    %385 = vmatpush1.msra.mxu0 0.0
    %386 = vmatprep.subr.mxu0 0.0
    %387 = vmatpush1.msra.mxu0 0.0
    %388 = vmatprep.subr.mxu0 0.0
    %389 = vmatpush1.msra.mxu0 0.0
    %390 = vmatprep.subr.mxu0 0.0
    %391 = vmatpush1.msra.mxu0 0.0
    %392 = vmatprep.subr.mxu0 0.0
    %393 = vmatpush1.msra.mxu0 0.0
    %394 = vmatprep.subr.mxu0 0.0
    %395 = vmatpush1.msra.mxu0 0.0
    %396 = vmatprep.subr.mxu0 0.0
    %397 = vmatpush1.msra.mxu0 0.0
    %398 = vmatprep.subr.mxu0 0.0
    %399 = vmatpush1.msra.mxu0 0.0
    %400 = vmatprep.mubr.f32.mxu0 0.0
    %401 = vmatmul.mubr.f32.gmra.mrb[0].mxu0 %v307
    %v402 = vpop.f32.mrb[0].mxu0
    %v403 = vadd.f32 0.0, %v402
    %v404 = vpop.f32.mrb[0].mxu0
    %405 = vmatprep.mubr.f32.mxu0 0.0
    %406 = vmatmul.mubr.f32.gmra.mrb[0].mxu0 %v310
    %v407 = vpop.f32.mrb[0].mxu0
    %v408 = vadd.f32 0.0, %v407
    %v409 = vpop.f32.mrb[0].mxu0
    %410 = vmatprep.mubr.f32.mxu0 0.0
    %411 = vmatmul.mubr.f32.gmra.mrb[0].mxu0 %v313
    %v412 = vpop.f32.mrb[0].mxu0
    %v413 = vadd.f32 0.0, %v412
    %v414 = vpop.f32.mrb[0].mxu0
    %415 = vmatprep.mubr.f32.mxu0 0.0
    %416 = vmatmul.mubr.f32.gmra.mrb[0].mxu0 %v316
    %v417 = vpop.f32.mrb[0].mxu0
    %v418 = vadd.f32 0.0, %v417
    %v419 = vpop.f32.mrb[0].mxu0
    %420 = vmatprep.mubr.f32.mxu0 0.0
    %421 = vmatmul.mubr.f32.gmra.mrb[0].mxu0 %v319
    %v422 = vpop.f32.mrb[0].mxu0
    %v423 = vadd.f32 0.0, %v422
    %v424 = vpop.f32.mrb[0].mxu0
    %425 = vmatprep.mubr.f32.mxu0 0.0
    %426 = vmatmul.mubr.f32.gmra.mrb[0].mxu0 %v322
    %v427 = vpop.f32.mrb[0].mxu0
    %v428 = vadd.f32 0.0, %v427
    %v429 = vpop.f32.mrb[0].mxu0
    %430 = vmatprep.mubr.f32.mxu0 0.0
    %431 = vmatmul.mubr.f32.gmra.mrb[0].mxu0 %v325
    %v432 = vpop.f32.mrb[0].mxu0
    %v433 = vadd.f32 0.0, %v432
    %v434 = vpop.f32.mrb[0].mxu0
    %435 = vmatprep.mubr.f32.mxu0 0.0
    %436 = vmatmul.mubr.f32.gmra.mrb[0].mxu0 %v328
    %v437 = vpop.f32.mrb[0].mxu0
    %v438 = vadd.f32 0.0, %v437
    %v439 = vpop.f32.mrb[0].mxu0
    %440 = vmatprep.mubr.f32.mxu0 0.0
    %441 = vmatmul.mubr.f32.gmra.mrb[0].mxu0 %v331
    %v442 = vpop.f32.mrb[0].mxu0
    %v443 = vadd.f32 0.0, %v442
    %v444 = vpop.f32.mrb[0].mxu0
    %445 = vmatprep.mubr.f32.mxu0 0.0
    %446 = vmatmul.mubr.f32.gmra.mrb[0].mxu0 %v334
    %v447 = vpop.f32.mrb[0].mxu0
    %v448 = vadd.f32 0.0, %v447
    %v449 = vpop.f32.mrb[0].mxu0
    %450 = vdwg.mxu0
    %v451 = vld [vmem:[%s5] sm:$0xff]
    %v452 = vld [vmem:[%s5 + $0x8] sm:$0xff]
    %v453 = vld [vmem:[%s5 + $0x10] sm:$0xff]
    %v454 = vld [vmem:[%s5 + $0x18] sm:$0xff]
    %v455 = vld [vmem:[%s4] sm:$0xff]
    %v456 = vld [vmem:[%s4 + $0x8] sm:$0xff]
    %v457 = vld [vmem:[%s4 + $0x10] sm:$0xff]
    %v458 = vlaneseq
    %v459 = vshrl.u32 %v458, 7
    %v460 = vsub.s32 0, %v459
    %v461 = vrot.slane %v448, %v460
    %v462 = vmul.f32 %v274, %v461
    %v463 = vmul.f32 %v277, %v461
    %v464 = vmul.f32 %v282, %v461
    %v465 = vmul.f32 %v285, %v461
    %467 = vset.pattern.permute.xlu0 0
    %468 = vperm.xlu0 %467, %v451
    %v469 = vpop.permute.xlu0 %468
    %472 = vset.pattern.permute.xlu0 0
    %473 = vperm.xlu0 %472, %v452
    %v474 = vpop.permute.xlu0 %473
    %477 = vset.pattern.permute.xlu0 0
    %478 = vperm.xlu0 %477, %v453
    %v479 = vpop.permute.xlu0 %478
    %482 = vset.pattern.permute.xlu0 0
    %483 = vperm.xlu0 %482, %v454
    %v484 = vpop.permute.xlu0 %483
    %v486 = vadd.f32 %v462, %v469
    %v487 = vadd.f32 %v463, %v474
    %v488 = vadd.f32 %v464, %v479
    %v489 = vadd.f32 %v465, %v484
    %v490 = vadd.f32 %v486, %v274
    %v491 = vadd.f32 %v487, %v277
    %v492 = vadd.f32 %v488, %v282
    %v493 = vadd.f32 %v489, %v285
    %vm494 = vcmask 261120
    %v496 = vsel %vm494, %v455, 0
    %498 = vmatprep.subr.mxu0 0.0
    %499 = vmatpush1.msra.mxu0 %v490
    %500 = vmatprep.subr.mxu0 0.0
    %501 = vmatpush1.msra.mxu0 %v491
    %502 = vmatprep.subr.mxu0 0.0
    %503 = vmatpush1.msra.mxu0 %v492
    %504 = vmatprep.subr.mxu0 0.0
    %505 = vmatpush1.msra.mxu0 %v493
    %506 = vmatprep.subr.mxu0 0.0
    %507 = vmatpush1.msra.mxu0 0.0
    %508 = vmatprep.subr.mxu0 0.0
    %509 = vmatpush1.msra.mxu0 0.0
    %510 = vmatprep.subr.mxu0 0.0
    %511 = vmatpush1.msra.mxu0 0.0
    %512 = vmatprep.subr.mxu0 0.0
    %513 = vmatpush1.msra.mxu0 0.0
    %514 = vmatprep.subr.mxu0 0.0
    %515 = vmatpush1.msra.mxu0 0.0
    %516 = vmatprep.subr.mxu0 0.0
    %517 = vmatpush1.msra.mxu0 0.0
    %518 = vmatprep.subr.mxu0 0.0
    %519 = vmatpush1.msra.mxu0 0.0
    %520 = vmatprep.subr.mxu0 0.0
    %521 = vmatpush1.msra.mxu0 0.0
    %522 = vmatprep.subr.mxu0 0.0
    %523 = vmatpush1.msra.mxu0 0.0
    %524 = vmatprep.subr.mxu0 0.0
    %525 = vmatpush1.msra.mxu0 0.0
    %526 = vmatprep.subr.mxu0 0.0
    %527 = vmatpush1.msra.mxu0 0.0
    %528 = vmatprep.subr.mxu0 0.0
    %529 = vmatpush1.msra.mxu0 0.0
    %530 = vmatprep.subr.mxu0 0.0
    %531 = vmatpush1.msra.mxu0 0.0
    %532 = vmatprep.subr.mxu0 0.0
    %533 = vmatpush1.msra.mxu0 0.0
    %534 = vmatprep.subr.mxu0 0.0
    %535 = vmatpush1.msra.mxu0 0.0
    %536 = vmatprep.subr.mxu0 0.0
    %537 = vmatpush1.msra.mxu0 0.0
    %538 = vmatprep.subr.mxu0 0.0
    %539 = vmatpush1.msra.mxu0 0.0
    %540 = vmatprep.subr.mxu0 0.0
    %541 = vmatpush1.msra.mxu0 0.0
    %542 = vmatprep.subr.mxu0 0.0
    %543 = vmatpush1.msra.mxu0 0.0
    %544 = vmatprep.subr.mxu0 0.0
    %545 = vmatpush1.msra.mxu0 0.0
    %546 = vmatprep.subr.mxu0 0.0
    %547 = vmatpush1.msra.mxu0 0.0
    %548 = vmatprep.subr.mxu0 0.0
    %549 = vmatpush1.msra.mxu0 0.0
    %550 = vmatprep.subr.mxu0 0.0
    %551 = vmatpush1.msra.mxu0 0.0
    %552 = vmatprep.subr.mxu0 0.0
    %553 = vmatpush1.msra.mxu0 0.0
    %554 = vmatprep.subr.mxu0 0.0
    %555 = vmatpush1.msra.mxu0 0.0
    %556 = vmatprep.subr.mxu0 0.0
    %557 = vmatpush1.msra.mxu0 0.0
    %558 = vmatprep.subr.mxu0 0.0
    %559 = vmatpush1.msra.mxu0 0.0
    %560 = vmatprep.subr.mxu0 0.0
    %561 = vmatpush1.msra.mxu0 0.0
    %562 = vmatprep.mubr.f32.mxu0 0.0
    %563 = vmatmul.mubr.f32.gmra.mrb[0].mxu0 %v496
    %v564 = vpop.f32.mrb[0].mxu0
    %v565 = vadd.f32 0.0, %v564
    %v566 = vpop.f32.mrb[0].mxu0
    %567 = vdwg.mxu0
    %v568 = vlaneseq
    %v569 = vshrl.u32 %v568, 7
    %v570 = vsub.s32 1, %v569
    %v571 = vrot.slane %v565, %v570
    %v572 = vmul.f32 %v274, %v571
    %v573 = vmul.f32 %v277, %v571
    %v574 = vmul.f32 %v282, %v571
    %v575 = vmul.f32 %v285, %v571
    %576 = vset.pattern.permute.xlu0 1
    %577 = vperm.xlu0 %576, %v451
    %v578 = vpop.permute.xlu0 %577
    %580 = vset.pattern.permute.xlu0 1
    %581 = vperm.xlu0 %580, %v452
    %v582 = vpop.permute.xlu0 %581
    %584 = vset.pattern.permute.xlu0 1
    %585 = vperm.xlu0 %584, %v453
    %v586 = vpop.permute.xlu0 %585
    %588 = vset.pattern.permute.xlu0 1
    %589 = vperm.xlu0 %588, %v454
    %v590 = vpop.permute.xlu0 %589
    %v592 = vadd.f32 %v572, %v578
    %v593 = vadd.f32 %v573, %v582
    %v594 = vadd.f32 %v574, %v586
    %v595 = vadd.f32 %v575, %v590
    %v596 = vadd.f32 %v592, %v490
    %v597 = vadd.f32 %v593, %v491
    %v598 = vadd.f32 %v594, %v492
    %v599 = vadd.f32 %v595, %v493
    %600 = vmatprep.subr.mxu0 0.0
    %601 = vmatpush1.msra.mxu0 %v596
    %602 = vmatprep.subr.mxu0 0.0
    %603 = vmatpush1.msra.mxu0 %v597
    %604 = vmatprep.subr.mxu0 0.0
    %605 = vmatpush1.msra.mxu0 %v598
    %606 = vmatprep.subr.mxu0 0.0
    %607 = vmatpush1.msra.mxu0 %v599
    %608 = vmatprep.subr.mxu0 0.0
    %609 = vmatpush1.msra.mxu0 0.0
    %610 = vmatprep.subr.mxu0 0.0
    %611 = vmatpush1.msra.mxu0 0.0
    %612 = vmatprep.subr.mxu0 0.0
    %613 = vmatpush1.msra.mxu0 0.0
    %614 = vmatprep.subr.mxu0 0.0
    %615 = vmatpush1.msra.mxu0 0.0
    %616 = vmatprep.subr.mxu0 0.0
    %617 = vmatpush1.msra.mxu0 0.0
    %618 = vmatprep.subr.mxu0 0.0
    %619 = vmatpush1.msra.mxu0 0.0
    %620 = vmatprep.subr.mxu0 0.0
    %621 = vmatpush1.msra.mxu0 0.0
    %622 = vmatprep.subr.mxu0 0.0
    %623 = vmatpush1.msra.mxu0 0.0
    %624 = vmatprep.subr.mxu0 0.0
    %625 = vmatpush1.msra.mxu0 0.0
    %626 = vmatprep.subr.mxu0 0.0
    %627 = vmatpush1.msra.mxu0 0.0
    %628 = vmatprep.subr.mxu0 0.0
    %629 = vmatpush1.msra.mxu0 0.0
    %630 = vmatprep.subr.mxu0 0.0
    %631 = vmatpush1.msra.mxu0 0.0
    %632 = vmatprep.subr.mxu0 0.0
    %633 = vmatpush1.msra.mxu0 0.0
    %634 = vmatprep.subr.mxu0 0.0
    %635 = vmatpush1.msra.mxu0 0.0
    %636 = vmatprep.subr.mxu0 0.0
    %637 = vmatpush1.msra.mxu0 0.0
    %638 = vmatprep.subr.mxu0 0.0
    %639 = vmatpush1.msra.mxu0 0.0
    %640 = vmatprep.subr.mxu0 0.0
    %641 = vmatpush1.msra.mxu0 0.0
    %642 = vmatprep.subr.mxu0 0.0
    %643 = vmatpush1.msra.mxu0 0.0
    %644 = vmatprep.subr.mxu0 0.0
    %645 = vmatpush1.msra.mxu0 0.0
    %646 = vmatprep.subr.mxu0 0.0
    %647 = vmatpush1.msra.mxu0 0.0
    %648 = vmatprep.subr.mxu0 0.0
    %649 = vmatpush1.msra.mxu0 0.0
    %650 = vmatprep.subr.mxu0 0.0
    %651 = vmatpush1.msra.mxu0 0.0
    %652 = vmatprep.subr.mxu0 0.0
    %653 = vmatpush1.msra.mxu0 0.0
    %654 = vmatprep.subr.mxu0 0.0
    %655 = vmatpush1.msra.mxu0 0.0
    %656 = vmatprep.subr.mxu0 0.0
    %657 = vmatpush1.msra.mxu0 0.0
    %658 = vmatprep.subr.mxu0 0.0
    %659 = vmatpush1.msra.mxu0 0.0
    %660 = vmatprep.subr.mxu0 0.0
    %661 = vmatpush1.msra.mxu0 0.0
    %662 = vmatprep.subr.mxu0 0.0
    %663 = vmatpush1.msra.mxu0 0.0
    %664 = vmatprep.mubr.f32.mxu0 0.0
    %665 = vmatmul.mubr.f32.gmra.mrb[0].mxu0 %v496
    %v666 = vpop.f32.mrb[0].mxu0
    %v667 = vadd.f32 0.0, %v666
    %v668 = vpop.f32.mrb[0].mxu0
    %669 = vdwg.mxu0
    %v670 = vlaneseq
    %v671 = vshrl.u32 %v670, 7
    %v672 = vsub.s32 2, %v671
    %v673 = vrot.slane %v667, %v672
    %v674 = vmul.f32 %v274, %v673
    %v675 = vmul.f32 %v277, %v673
    %v676 = vmul.f32 %v282, %v673
    %v677 = vmul.f32 %v285, %v673
    %678 = vset.pattern.permute.xlu0 2
    %679 = vperm.xlu0 %678, %v451
    %v680 = vpop.permute.xlu0 %679
    %682 = vset.pattern.permute.xlu0 2
    %683 = vperm.xlu0 %682, %v452
    %v684 = vpop.permute.xlu0 %683
    %686 = vset.pattern.permute.xlu0 2
    %687 = vperm.xlu0 %686, %v453
    %v688 = vpop.permute.xlu0 %687
    %690 = vset.pattern.permute.xlu0 2
    %691 = vperm.xlu0 %690, %v454
    %v692 = vpop.permute.xlu0 %691
    %v694 = vadd.f32 %v674, %v680
    %v695 = vadd.f32 %v675, %v684
    %v696 = vadd.f32 %v676, %v688
    %v697 = vadd.f32 %v677, %v692
    %v698 = vadd.f32 %v694, %v596
    %v699 = vadd.f32 %v695, %v597
    %v700 = vadd.f32 %v696, %v598
    %v701 = vadd.f32 %v697, %v599
    %v702 = vmax.f32 %v403, 0.0
    %v703 = vmax.f32 %v408, 0.0
    %v704 = vmax.f32 %v413, 0.0
    %v705 = vmax.f32 %v418, 0.0
    %v706 = vmax.f32 %v423, 0.0
    %v707 = vmax.f32 %v428, 0.0
    %v708 = vmax.f32 %v433, 0.0
    %v709 = vmax.f32 %v438, 0.0
    %v710 = vmax.f32 %v443, 0.0
    %v711 = vld [vmem:[%s3] sm:$0xff]
    %v712 = vld [vmem:[%s3 + $0x8] sm:$0xff]
    %v713 = vld [vmem:[%s3 + $0x10] sm:$0xff]
    %v714 = vld [vmem:[%s3 + $0x18] sm:$0xff]
    %vm715 = vcmask 588800
    %v717 = vsel %vm715, %v711, 0
    %v720 = vsel %vm715, %v712, 0
    %v723 = vsel %vm715, %v713, 0
    %v726 = vsel %vm715, %v714, 0
    %728 = vmatprep.subr.mxu0 0.0
    %729 = vmatpush1.msra.mxu0 %v702
    %730 = vmatprep.subr.mxu0 0.0
    %731 = vmatpush1.msra.mxu0 %v703
    %732 = vmatprep.subr.mxu0 0.0
    %733 = vmatpush1.msra.mxu0 %v704
    %734 = vmatprep.subr.mxu0 0.0
    %735 = vmatpush1.msra.mxu0 %v705
    %736 = vmatprep.subr.mxu0 0.0
    %737 = vmatpush1.msra.mxu0 %v706
    %738 = vmatprep.subr.mxu0 0.0
    %739 = vmatpush1.msra.mxu0 %v707
    %740 = vmatprep.subr.mxu0 0.0
    %741 = vmatpush1.msra.mxu0 %v708
    %742 = vmatprep.subr.mxu0 0.0
    %743 = vmatpush1.msra.mxu0 %v709
    %744 = vmatprep.subr.mxu0 0.0
    %745 = vmatpush1.msra.mxu0 %v710
    %746 = vmatprep.subr.mxu0 0.0
    %747 = vmatpush1.msra.mxu0 0.0
    %748 = vmatprep.subr.mxu0 0.0
    %749 = vmatpush1.msra.mxu0 0.0
    %750 = vmatprep.subr.mxu0 0.0
    %751 = vmatpush1.msra.mxu0 0.0
    %752 = vmatprep.subr.mxu0 0.0
    %753 = vmatpush1.msra.mxu0 0.0
    %754 = vmatprep.subr.mxu0 0.0
    %755 = vmatpush1.msra.mxu0 0.0
    %756 = vmatprep.subr.mxu0 0.0
    %757 = vmatpush1.msra.mxu0 0.0
    %758 = vmatprep.subr.mxu0 0.0
    %759 = vmatpush1.msra.mxu0 0.0
    %760 = vmatprep.subr.mxu0 0.0
    %761 = vmatpush1.msra.mxu0 0.0
    %762 = vmatprep.subr.mxu0 0.0
    %763 = vmatpush1.msra.mxu0 0.0
    %764 = vmatprep.subr.mxu0 0.0
    %765 = vmatpush1.msra.mxu0 0.0
    %766 = vmatprep.subr.mxu0 0.0
    %767 = vmatpush1.msra.mxu0 0.0
    %768 = vmatprep.subr.mxu0 0.0
    %769 = vmatpush1.msra.mxu0 0.0
    %770 = vmatprep.subr.mxu0 0.0
    %771 = vmatpush1.msra.mxu0 0.0
    %772 = vmatprep.subr.mxu0 0.0
    %773 = vmatpush1.msra.mxu0 0.0
    %774 = vmatprep.subr.mxu0 0.0
    %775 = vmatpush1.msra.mxu0 0.0
    %776 = vmatprep.subr.mxu0 0.0
    %777 = vmatpush1.msra.mxu0 0.0
    %778 = vmatprep.subr.mxu0 0.0
    %779 = vmatpush1.msra.mxu0 0.0
    %780 = vmatprep.subr.mxu0 0.0
    %781 = vmatpush1.msra.mxu0 0.0
    %782 = vmatprep.subr.mxu0 0.0
    %783 = vmatpush1.msra.mxu0 0.0
    %784 = vmatprep.subr.mxu0 0.0
    %785 = vmatpush1.msra.mxu0 0.0
    %786 = vmatprep.subr.mxu0 0.0
    %787 = vmatpush1.msra.mxu0 0.0
    %788 = vmatprep.subr.mxu0 0.0
    %789 = vmatpush1.msra.mxu0 0.0
    %790 = vmatprep.subr.mxu0 0.0
    %791 = vmatpush1.msra.mxu0 0.0
    %792 = vmatprep.mubr.f32.mxu0 0.0
    %793 = vmatmul.mubr.f32.gmra.mrb[0].mxu0 %v717
    %v794 = vpop.f32.mrb[0].mxu0
    %v795 = vadd.f32 0.0, %v794
    %v796 = vpop.f32.mrb[0].mxu0
    %797 = vmatprep.mubr.f32.mxu0 0.0
    %798 = vmatmul.mubr.f32.gmra.mrb[0].mxu0 %v720
    %v799 = vpop.f32.mrb[0].mxu0
    %v800 = vadd.f32 0.0, %v799
    %v801 = vpop.f32.mrb[0].mxu0
    %802 = vmatprep.mubr.f32.mxu0 0.0
    %803 = vmatmul.mubr.f32.gmra.mrb[0].mxu0 %v723
    %v804 = vpop.f32.mrb[0].mxu0
    %v805 = vadd.f32 0.0, %v804
    %v806 = vpop.f32.mrb[0].mxu0
    %807 = vmatprep.mubr.f32.mxu0 0.0
    %808 = vmatmul.mubr.f32.gmra.mrb[0].mxu0 %v726
    %v809 = vpop.f32.mrb[0].mxu0
    %v810 = vadd.f32 0.0, %v809
    %v811 = vpop.f32.mrb[0].mxu0
    %812 = vdwg.mxu0
    %v813 = vmax.f32 %v795, 0.0
    %v814 = vmax.f32 %v800, 0.0
    %v815 = vmax.f32 %v805, 0.0
    %v816 = vmax.f32 %v810, 0.0
    %v818 = vsel %vm494, %v457, 0
    %820 = vmatprep.subr.mxu0 0.0
    %821 = vmatpush1.msra.mxu0 %v813
    %822 = vmatprep.subr.mxu0 0.0
    %823 = vmatpush1.msra.mxu0 %v814
    %824 = vmatprep.subr.mxu0 0.0
    %825 = vmatpush1.msra.mxu0 %v815
    %826 = vmatprep.subr.mxu0 0.0
    %827 = vmatpush1.msra.mxu0 %v816
    %828 = vmatprep.subr.mxu0 0.0
    %829 = vmatpush1.msra.mxu0 0.0
    %830 = vmatprep.subr.mxu0 0.0
    %831 = vmatpush1.msra.mxu0 0.0
    %832 = vmatprep.subr.mxu0 0.0
    %833 = vmatpush1.msra.mxu0 0.0
    %834 = vmatprep.subr.mxu0 0.0
    %835 = vmatpush1.msra.mxu0 0.0
    %836 = vmatprep.subr.mxu0 0.0
    %837 = vmatpush1.msra.mxu0 0.0
    %838 = vmatprep.subr.mxu0 0.0
    %839 = vmatpush1.msra.mxu0 0.0
    %840 = vmatprep.subr.mxu0 0.0
    %841 = vmatpush1.msra.mxu0 0.0
    %842 = vmatprep.subr.mxu0 0.0
    %843 = vmatpush1.msra.mxu0 0.0
    %844 = vmatprep.subr.mxu0 0.0
    %845 = vmatpush1.msra.mxu0 0.0
    %846 = vmatprep.subr.mxu0 0.0
    %847 = vmatpush1.msra.mxu0 0.0
    %848 = vmatprep.subr.mxu0 0.0
    %849 = vmatpush1.msra.mxu0 0.0
    %850 = vmatprep.subr.mxu0 0.0
    %851 = vmatpush1.msra.mxu0 0.0
    %852 = vmatprep.subr.mxu0 0.0
    %853 = vmatpush1.msra.mxu0 0.0
    %854 = vmatprep.subr.mxu0 0.0
    %855 = vmatpush1.msra.mxu0 0.0
    %856 = vmatprep.subr.mxu0 0.0
    %857 = vmatpush1.msra.mxu0 0.0
    %858 = vmatprep.subr.mxu0 0.0
    %859 = vmatpush1.msra.mxu0 0.0
    %860 = vmatprep.subr.mxu0 0.0
    %861 = vmatpush1.msra.mxu0 0.0
    %862 = vmatprep.subr.mxu0 0.0
    %863 = vmatpush1.msra.mxu0 0.0
    %864 = vmatprep.subr.mxu0 0.0
    %865 = vmatpush1.msra.mxu0 0.0
    %866 = vmatprep.subr.mxu0 0.0
    %867 = vmatpush1.msra.mxu0 0.0
    %868 = vmatprep.subr.mxu0 0.0
    %869 = vmatpush1.msra.mxu0 0.0
    %870 = vmatprep.subr.mxu0 0.0
    %871 = vmatpush1.msra.mxu0 0.0
    %872 = vmatprep.subr.mxu0 0.0
    %873 = vmatpush1.msra.mxu0 0.0
    %874 = vmatprep.subr.mxu0 0.0
    %875 = vmatpush1.msra.mxu0 0.0
    %876 = vmatprep.subr.mxu0 0.0
    %877 = vmatpush1.msra.mxu0 0.0
    %878 = vmatprep.subr.mxu0 0.0
    %879 = vmatpush1.msra.mxu0 0.0
    %880 = vmatprep.subr.mxu0 0.0
    %881 = vmatpush1.msra.mxu0 0.0
    %882 = vmatprep.subr.mxu0 0.0
    %883 = vmatpush1.msra.mxu0 0.0
    %884 = vmatprep.mubr.f32.mxu0 0.0
    %885 = vmatmul.mubr.f32.gmra.mrb[0].mxu0 %v818
    %v886 = vpop.f32.mrb[0].mxu0
    %v887 = vadd.f32 0.0, %v886
    %v888 = vpop.f32.mrb[0].mxu0
    %889 = vdwg.mxu0
    %v891 = vsel %vm494, %v456, 0
    %893 = vmatprep.subr.mxu0 0.0
    %894 = vmatpush1.msra.mxu0 %v698
    %895 = vmatprep.subr.mxu0 0.0
    %896 = vmatpush1.msra.mxu0 %v699
    %897 = vmatprep.subr.mxu0 0.0
    %898 = vmatpush1.msra.mxu0 %v700
    %899 = vmatprep.subr.mxu0 0.0
    %900 = vmatpush1.msra.mxu0 %v701
    %901 = vmatprep.subr.mxu0 0.0
    %902 = vmatpush1.msra.mxu0 0.0
    %903 = vmatprep.subr.mxu0 0.0
    %904 = vmatpush1.msra.mxu0 0.0
    %905 = vmatprep.subr.mxu0 0.0
    %906 = vmatpush1.msra.mxu0 0.0
    %907 = vmatprep.subr.mxu0 0.0
    %908 = vmatpush1.msra.mxu0 0.0
    %909 = vmatprep.subr.mxu0 0.0
    %910 = vmatpush1.msra.mxu0 0.0
    %911 = vmatprep.subr.mxu0 0.0
    %912 = vmatpush1.msra.mxu0 0.0
    %913 = vmatprep.subr.mxu0 0.0
    %914 = vmatpush1.msra.mxu0 0.0
    %915 = vmatprep.subr.mxu0 0.0
    %916 = vmatpush1.msra.mxu0 0.0
    %917 = vmatprep.subr.mxu0 0.0
    %918 = vmatpush1.msra.mxu0 0.0
    %919 = vmatprep.subr.mxu0 0.0
    %920 = vmatpush1.msra.mxu0 0.0
    %921 = vmatprep.subr.mxu0 0.0
    %922 = vmatpush1.msra.mxu0 0.0
    %923 = vmatprep.subr.mxu0 0.0
    %924 = vmatpush1.msra.mxu0 0.0
    %925 = vmatprep.subr.mxu0 0.0
    %926 = vmatpush1.msra.mxu0 0.0
    %927 = vmatprep.subr.mxu0 0.0
    %928 = vmatpush1.msra.mxu0 0.0
    %929 = vmatprep.subr.mxu0 0.0
    %930 = vmatpush1.msra.mxu0 0.0
    %931 = vmatprep.subr.mxu0 0.0
    %932 = vmatpush1.msra.mxu0 0.0
    %933 = vmatprep.subr.mxu0 0.0
    %934 = vmatpush1.msra.mxu0 0.0
    %935 = vmatprep.subr.mxu0 0.0
    %936 = vmatpush1.msra.mxu0 0.0
    %937 = vmatprep.subr.mxu0 0.0
    %938 = vmatpush1.msra.mxu0 0.0
    %939 = vmatprep.subr.mxu0 0.0
    %940 = vmatpush1.msra.mxu0 0.0
    %941 = vmatprep.subr.mxu0 0.0
    %942 = vmatpush1.msra.mxu0 0.0
    %943 = vmatprep.subr.mxu0 0.0
    %944 = vmatpush1.msra.mxu0 0.0
    %945 = vmatprep.subr.mxu0 0.0
    %946 = vmatpush1.msra.mxu0 0.0
    %947 = vmatprep.subr.mxu0 0.0
    %948 = vmatpush1.msra.mxu0 0.0
    %949 = vmatprep.subr.mxu0 0.0
    %950 = vmatpush1.msra.mxu0 0.0
    %951 = vmatprep.subr.mxu0 0.0
    %952 = vmatpush1.msra.mxu0 0.0
    %953 = vmatprep.subr.mxu0 0.0
    %954 = vmatpush1.msra.mxu0 0.0
    %955 = vmatprep.subr.mxu0 0.0
    %956 = vmatpush1.msra.mxu0 0.0
    %957 = vmatprep.mubr.f32.mxu0 0.0
    %958 = vmatmul.mubr.f32.gmra.mrb[0].mxu0 %v891
    %v959 = vpop.f32.mrb[0].mxu0
    %v960 = vadd.f32 %v887, %v959
    %v961 = vpop.f32.mrb[0].mxu0
    %962 = vdwg.mxu0
    %s963 = sld [smem:[#allocation2]]
    %v964 = vstv %s963
    %v965 = vadd.f32 %v960, %v964
    %v966 = vxor.u32 %v965, 2147483648
    %v967 = vmul.f32 %v966, 1.442695
    %v968 = vpow.pop %v967
    %v969 = vadd.f32 %v968, 1.0
    %v970 = vrcp.pop %v969
    %v971 = vmul.f32 1.0, %v970
    %972 = vst [vmem:[#allocation3] sm:$0x1] %v971
    // Predicated region
    $region30: #{tpu_custom_call.1} parent=1 // pred_check
      _
    $region31: #{tpu_custom_call.1} parent=1 // pred_check_branch
      %974 = sbr.rel (0) target = $region33
    $region32: #{tpu_custom_call.1} parent=1 // pred_region
      %s976 = ssub.s32 16, 16
      %977 = vsyncadd [#allocation4], %s976
      %s979 = sshll.u32 [#allocation3], 4
      %s980 = int_to_ptr.vmem [resolvable:$true] %s979
      %982 = dma.vmem_to_hbm [thread:$0]  %s980, 16, %s7, [#allocation4]
    $region33: #{tpu_custom_call.1} parent=1 // pred_fallthru
      _
    // Predicated region
    $region34: #{tpu_custom_call.1} parent=1 // pred_check
      _
    $region35: #{tpu_custom_call.1} parent=1 // pred_check_branch
      %984 = sbr.rel (0) target = $region37
    $region36: #{tpu_custom_call.1} parent=1 // pred_region
      %985 = dma.done [#allocation4], 16
    $region37: #{tpu_custom_call.1} parent=1 // pred_fallthru
      _
    %986 = vsyncpa [#allocation4], 1

</llo_original>
